<compile_context>
chip_gen: v7x
topology: tpu7x:2x2x1
jax: 0.10.0
libtpu: 0.0.40
codegen_flags: <defaults>
</compile_context>

<pallas_src>
import functools
import math
from typing import NamedTuple

import jax
import jax.numpy as jnp
from jax.experimental import pallas as pl
from jax.experimental.pallas import tpu as pltpu

INV_SQRT2 = 1.0 / math.sqrt(2.0)
_LANE = 128


def _round_up(n: int, m: int) -> int:
    return ((n + m - 1) // m) * m


def _sublane_multiple(dtype) -> int:
    # Second-to-last dim packing: 8 rows for 32-bit, 16 for 16-bit, 32 for 8-bit dtypes.
    return 8 * max(1, 4 // jnp.dtype(dtype).itemsize)


def _device_vmem_bytes() -> int:
    try:
        return int(pltpu.get_tpu_info().vmem_capacity_bytes)
    except Exception:
        return 64 * 1024 * 1024  # conservative: v7x per-TensorCore VMEM


def _gelu_f32(h, approximate: bool):
    if approximate:
        # tanh GELU routes through the EUP slot (essentially free under the MXU).
        return jax.nn.gelu(h, approximate=True)
    # Exact erf GELU: matches torch.nn.GELU() default.
    return 0.5 * h * (1.0 + jax.lax.erf(h * INV_SQRT2))


# --------------------------------- kernels ---------------------------------


def _mlp_kernel_single(x_ref, w1_ref, b1_ref, w2_ref, b2_ref, o_ref, *, approximate_gelu):
    """Whole hidden dim resident: fc1 -> GELU -> fc2 in one grid step per row tile."""
    h = jnp.dot(x_ref[...], w1_ref[...], preferred_element_type=jnp.float32)
    h = _gelu_f32(h + b1_ref[...], approximate_gelu)
    o = jnp.dot(h.astype(w2_ref.dtype), w2_ref[...], preferred_element_type=jnp.float32)
    # dropout(p=0.0) is the identity.
    o_ref[...] = (o + b2_ref[...]).astype(o_ref.dtype)


def _mlp_kernel_reduce(x_ref, w1_ref, b1_ref, w2_ref, b2_ref, o_ref, acc_ref, *, approximate_gelu):
    """Hidden dim tiled: accumulate fc2 partial products in an f32 VMEM scratch."""
    hi = pl.program_id(1)
    h = jnp.dot(x_ref[...], w1_ref[...], preferred_element_type=jnp.float32)
    h = _gelu_f32(h + b1_ref[...], approximate_gelu)
    partial = jnp.dot(h.astype(w2_ref.dtype), w2_ref[...], preferred_element_type=jnp.float32)

    @pl.when(hi == 0)
    def _():
        acc_ref[...] = partial

    @pl.when(hi != 0)
    def _():
        acc_ref[...] = acc_ref[...] + partial

    @pl.when(hi == pl.num_programs(1) - 1)
    def _():
        # dropout(p=0.0) is the identity.
        o_ref[...] = (acc_ref[...] + b2_ref[...]).astype(o_ref.dtype)


# ------------------------------ wrapper API --------------------------------


class MLPParams(NamedTuple):
    w1p: jax.Array          # (Cin_p, H_pp)   compute dtype
    b1p: jax.Array          # (1, H_pp)       float32
    w2p: jax.Array          # (H_pp, Cout_p)  compute dtype
    b2p: jax.Array          # (1, Cout_p)     float32
    cin: int
    cout: int
    hidden_tile: int        # th; H_pp % th == 0
    row_tile: int           # upper bound on the row tile
    approximate_gelu: bool
    vmem_limit_bytes: int


def prepare_mlp(w1, b1, w2, b2, *, compute_dtype=None, row_tile=None, hidden_tile=None,
                approximate_gelu=False, vmem_headroom_bytes=8 * 1024 * 1024):
    """Pad / cast parameters once (hoisted out of the per-call path) and pick tiling.

    Zero channel-padding is exact: padded Cin columns x padded w1 rows contribute 0,
    GELU(0 + 0 bias)=0, padded hidden rows of w2 are 0, padded Cout columns are sliced off.
    """
    Cin, H = w1.shape
    H2, Cout = w2.shape
    assert H == H2 and b1.shape == (H,) and b2.shape == (Cout,), "weight shapes inconsistent"

    if compute_dtype is None:
        # MXU-native bf16 operands by default; full-f32 operands are opt-in.
        wide_float = jnp.issubdtype(w1.dtype, jnp.floating) and jnp.dtype(w1.dtype).itemsize >= 4
        compute_dtype = jnp.bfloat16 if wide_float else w1.dtype
    compute_dtype = jnp.dtype(compute_dtype)
    csize = compute_dtype.itemsize

    vmem_cap = _device_vmem_bytes()
    budget = max(vmem_cap - vmem_headroom_bytes, 16 * 1024 * 1024)

    # Default row tile: 512 on 128-MiB VMEM chips (v5e/v6e), 256 on 64-MiB v7x.
    if row_tile is None:
        row_tile = 512 if vmem_cap >= 96 * 1024 * 1024 else 256
    sub = _sublane_multiple(compute_dtype)
    row_tile = max(sub, _round_up(int(row_tile), sub))

    Cin_p = _round_up(Cin, _LANE)
    H_p = _round_up(H, _LANE)
    Cout_p = _round_up(Cout, _LANE)

    # VMEM that does not depend on the hidden tile: double-buffered x / out row tiles,
    # the f32 accumulator scratch, and b2.
    fixed = (2 * row_tile * Cin_p * csize
             + 2 * row_tile * Cout_p * 4
             + row_tile * Cout_p * 4
             + 2 * Cout_p * 4)

    def step_bytes(th, nbuf):
        # w1/b1/w2 tiles (nbuf-buffered) + f32 GELU intermediate + its compute-dtype cast.
        return nbuf * ((Cin_p + Cout_p) * th * csize + th * 4) + row_tile * th * (4 + csize)

    if hidden_tile is not None:
        th = min(_round_up(int(hidden_tile), _LANE), H_p)
    elif fixed + step_bytes(H_p, 1) <= budget:
        th = H_p                     # whole hidden dim VMEM-resident (single-buffered)
    else:
        denom = 2 * (Cin_p + Cout_p) * csize + 2 * 4 + row_tile * (4 + csize)
        raw = max((budget - fixed) // denom, _LANE)
        th = min(max(_LANE, (raw // _LANE) * _LANE), H_p)

    n_h = (H_p + th - 1) // th
    H_pp = n_h * th                  # extra zero-padded hidden columns contribute exactly 0

    w1p = jnp.pad(jnp.asarray(w1, dtype=compute_dtype), ((0, Cin_p - Cin), (0, H_pp - H)))
    b1p = jnp.pad(jnp.asarray(b1, dtype=jnp.float32), (0, H_pp - H)).reshape(1, H_pp)
    w2p = jnp.pad(jnp.asarray(w2, dtype=compute_dtype), ((0, H_pp - H), (0, Cout_p - Cout)))
    b2p = jnp.pad(jnp.asarray(b2, dtype=jnp.float32), (0, Cout_p - Cout)).reshape(1, Cout_p)

    est = fixed + step_bytes(th, 1 if n_h == 1 else 2)
    vmem_limit = int(min(budget, max(32 * 1024 * 1024, int(est * 1.25))))

    return MLPParams(w1p, b1p, w2p, b2p, int(Cin), int(Cout), int(th), int(row_tile),
                     bool(approximate_gelu), vmem_limit)


def mlp_apply(params: MLPParams, x):
    """Forward pass. x: (..., Cin) -> (..., Cout)."""
    lead_shape = x.shape[:-1]
    Cin = x.shape[-1]
    assert Cin == params.cin, "input feature dim inconsistent with the prepared params"
    x2d = x.reshape(-1, Cin)
    N = x2d.shape[0]

    compute_dtype = params.w1p.dtype
    out_dtype = x.dtype
    Cin_p, H_pp = params.w1p.shape
    Cout_p = params.w2p.shape[1]
    th = params.hidden_tile
    n_h = H_pp // th

    # Row tile: multiple of the sublane packing; at least two row-grid steps when N allows
    # (so the "parallel" axis can shard across both v7x TensorCores). No row padding: the
    # ragged last block is masked by Pallas; garbage rows are row-local and never written.
    sub = max(_sublane_multiple(compute_dtype), _sublane_multiple(out_dtype))
    tm = min(params.row_tile, _round_up(max(N, 1), sub))
    if N > sub:
        tm = min(tm, _round_up((N + 1) // 2, sub))
    tm = max(sub, (tm // sub) * sub)
    n_rows = (N + tm - 1) // tm

    xp = jnp.asarray(x2d, dtype=compute_dtype)
    if Cin_p != Cin:
        xp = jnp.pad(xp, ((0, 0), (0, Cin_p - Cin)))   # lane-dense channel padding

    def build_and_call(single_buffer_weights: bool):
        const_mode = pl.Buffered(1) if single_buffer_weights else None

        def wspec(shape, index_map):
            if const_mode is None:
                return pl.BlockSpec(shape, index_map)
            return pl.BlockSpec(shape, index_map, pipeline_mode=const_mode)

        in_specs = [
            pl.BlockSpec((tm, Cin_p), lambda i, h: (i, 0)),
            wspec((Cin_p, th), lambda i, h: (0, h)),
            wspec((1, th), lambda i, h: (0, h)),
            wspec((th, Cout_p), lambda i, h: (h, 0)),
            wspec((1, Cout_p), lambda i, h: (0, 0)),
        ]
        out_specs = pl.BlockSpec((tm, Cout_p), lambda i, h: (i, 0))

        if n_h == 1:
            kernel = functools.partial(_mlp_kernel_single,
                                       approximate_gelu=params.approximate_gelu)
            scratch = ()
        else:
            kernel = functools.partial(_mlp_kernel_reduce,
                                       approximate_gelu=params.approximate_gelu)
            scratch = (pltpu.VMEM((tm, Cout_p), jnp.float32),)

        return pl.pallas_call(
            kernel,
            out_shape=jax.ShapeDtypeStruct((N, Cout_p), out_dtype),
            grid_spec=pltpu.PrefetchScalarGridSpec(
                num_scalar_prefetch=0,
                grid=(n_rows, n_h),
                in_specs=in_specs,
                out_specs=out_specs,
                scratch_shapes=scratch,
            ),
            compiler_params=pltpu.CompilerParams(
                dimension_semantics=("parallel", "arbitrary"),
                vmem_limit_bytes=params.vmem_limit_bytes,
            ),
        )(xp, params.w1p, params.b1p, params.w2p, params.b2p)

    single_buffer = n_h == 1   # weight/bias blocks are grid-invariant only in this case
    try:
        out_p = build_and_call(single_buffer)
    except Exception:
        if not single_buffer:
            raise
        # pipeline_mode / pl.Buffered(1) unsupported by this jax version: fall back to the
        # default double buffering (identical results, slightly more VMEM).
        out_p = build_and_call(False)

    if Cout_p != params.cout:
        out_p = out_p[:, :params.cout]
    return out_p.reshape(*lead_shape, params.cout)


def mlp_pallas(x, w1, b1, w2, b2, **prepare_kwargs):
    """One-shot convenience wrapper (prefer prepare_mlp + mlp_apply to amortize padding)."""
    return mlp_apply(prepare_mlp(w1, b1, w2, b2, **prepare_kwargs), x)


def mlp_reference(x, w1, b1, w2, b2):
    h = x.astype(jnp.float32) @ w1.astype(jnp.float32) + b1.astype(jnp.float32)
    h = 0.5 * h * (1.0 + jax.lax.erf(h * INV_SQRT2))
    o = h @ w2.astype(jnp.float32) + b2.astype(jnp.float32)
    return o.astype(x.dtype)


if __name__ == "__main__":
    key = jax.random.PRNGKey(0)
    (k_x1, k_x2, k_x3, k_w1, k_b1, k_w2, k_b2,
     k_w1b, k_b1b, k_w2b, k_b2b) = jax.random.split(key, 11)

    # ---- Model 1: MLP(in=32, hidden=64, out=32), nn.Linear-style init ----
    Cin, Hid, Cout = 32, 64, 32
    bound1 = 1.0 / math.sqrt(Cin)
    w1 = jax.random.uniform(k_w1, (Cin, Hid), minval=-bound1, maxval=bound1, dtype=jnp.float32)
    b1 = jax.random.uniform(k_b1, (Hid,), minval=-bound1, maxval=bound1, dtype=jnp.float32)
    bound2 = 1.0 / math.sqrt(Hid)
    w2 = jax.random.uniform(k_w2, (Hid, Cout), minval=-bound2, maxval=bound2, dtype=jnp.float32)
    b2 = jax.random.uniform(k_b2, (Cout,), minval=-bound2, maxval=bound2, dtype=jnp.float32)

    # Test 1: default fast path (bf16 operands, f32 accumulation), single hidden step,
    # parameters padded/cast once via prepare_mlp and reused.
    params_bf16 = prepare_mlp(w1, b1, w2, b2)
    N1 = 16
    x1 = jax.random.normal(k_x1, (N1, Cin), dtype=jnp.float32)
    out1 = jax.block_until_ready(mlp_apply(params_bf16, x1))
    ref1 = mlp_reference(x1, w1, b1, w2, b2)
    assert out1.shape == (N1, Cout)
    assert jnp.allclose(out1, ref1, atol=5e-2, rtol=5e-2), "mismatch vs reference (test 1, bf16)"

    # Test 2: opt-in f32 operands; N=40 -> two row-grid steps with a ragged last block.
    params_f32 = prepare_mlp(w1, b1, w2, b2, compute_dtype=jnp.float32)
    N2 = 40
    x2 = jax.random.normal(k_x2, (N2, Cin), dtype=jnp.float32)
    out2 = jax.block_until_ready(mlp_apply(params_f32, x2))
    ref2 = mlp_reference(x2, w1, b1, w2, b2)
    assert out2.shape == (N2, Cout)
    assert jnp.allclose(out2, ref2, atol=1e-5, rtol=1e-5), "mismatch vs reference (test 2, f32)"

    # ---- Model 2: hidden=256, forced hidden_tile=128 -> exercises the H-reduction path ----
    Cin3, Hid3, Cout3 = 32, 256, 48
    bnd1 = 1.0 / math.sqrt(Cin3)
    bnd2 = 1.0 / math.sqrt(Hid3)
    w1c = jax.random.uniform(k_w1b, (Cin3, Hid3), minval=-bnd1, maxval=bnd1, dtype=jnp.float32)
    b1c = jax.random.uniform(k_b1b, (Hid3,), minval=-bnd1, maxval=bnd1, dtype=jnp.float32)
    w2c = jax.random.uniform(k_w2b, (Hid3, Cout3), minval=-bnd2, maxval=bnd2, dtype=jnp.float32)
    b2c = jax.random.uniform(k_b2b, (Cout3,), minval=-bnd2, maxval=bnd2, dtype=jnp.float32)

    params_red = prepare_mlp(w1c, b1c, w2c, b2c, compute_dtype=jnp.float32, hidden_tile=128)
    N3 = 24
    x3 = jax.random.normal(k_x3, (N3, Cin3), dtype=jnp.float32)
    out3 = jax.block_until_ready(mlp_apply(params_red, x3))
    ref3 = mlp_reference(x3, w1c, b1c, w2c, b2c)
    assert out3.shape == (N3, Cout3)
    assert jnp.allclose(out3, ref3, atol=1e-4, rtol=1e-4), "mismatch vs reference (test 3, H-tiled)"

    print("KERNEL_OK")
</pallas_src>

<mosaic_0001>
module attributes {stable_mosaic.version = 11 : i64} {
  func.func @_mlp_kernel_single(%arg0: i32, %arg1: i32, %arg2: memref<16x128xbf16, #tpu.memory_space<vmem>>, %arg3: memref<128x128xbf16, #tpu.memory_space<vmem>>, %arg4: memref<1x128xf32, #tpu.memory_space<vmem>>, %arg5: memref<128x128xbf16, #tpu.memory_space<vmem>>, %arg6: memref<1x128xf32, #tpu.memory_space<vmem>>, %arg7: memref<16x128xf32, #tpu.memory_space<vmem>>) attributes {dimension_semantics = [#tpu.dimension_semantics<parallel>, #tpu.dimension_semantics<arbitrary>], iteration_bounds = array<i64: 1, 1>, scalar_prefetch = 0 : i64, scratch_operands = 0 : i64, tpu.core_type = #tpu.core_type<tc>, window_params = [{transform_indices = @transform_0, window_bounds = array<i64: 16, 128>}, {pipeline_mode = #tpu.pipeline_mode<synchronous>, transform_indices = @transform_1, window_bounds = array<i64: 128, 128>}, {pipeline_mode = #tpu.pipeline_mode<synchronous>, transform_indices = @transform_2, window_bounds = array<i64: 1, 128>}, {pipeline_mode = #tpu.pipeline_mode<synchronous>, transform_indices = @transform_3, window_bounds = array<i64: 128, 128>}, {pipeline_mode = #tpu.pipeline_mode<synchronous>, transform_indices = @transform_4, window_bounds = array<i64: 1, 128>}, {transform_indices = @transform_5, window_bounds = array<i64: 16, 128>}]} {
    %c0 = arith.constant 0 : index
    %c0_0 = arith.constant 0 : index
    %0 = vector.load %arg2[%c0, %c0_0] : memref<16x128xbf16, #tpu.memory_space<vmem>>, vector<16x128xbf16>
    %c0_1 = arith.constant 0 : index
    %c0_2 = arith.constant 0 : index
    %1 = vector.load %arg3[%c0_1, %c0_2] : memref<128x128xbf16, #tpu.memory_space<vmem>>, vector<128x128xbf16>
    %cst = arith.constant dense<0.000000e+00> : vector<16x128xf32>
    %2 = tpu.matmul %0, %1, %cst {dimension_numbers = #tpu.dot_dimension_numbers<[1], [0], [0], [1], [0, 0, 1, 1], [], []>} : vector<16x128xbf16>, vector<128x128xbf16>, vector<16x128xf32> -> vector<16x128xf32>
    %c0_3 = arith.constant 0 : index
    %c0_4 = arith.constant 0 : index
    %3 = vector.load %arg4[%c0_3, %c0_4] : memref<1x128xf32, #tpu.memory_space<vmem>>, vector<1x128xf32>
    %4 = vector.broadcast %3 : vector<1x128xf32> to vector<16x128xf32>
    %5 = arith.addf %2, %4 : vector<16x128xf32>
    %cst_5 = arith.constant 5.000000e-01 : f32
    %6 = vector.broadcast %cst_5 : f32 to vector<16x128xf32>
    %7 = arith.mulf %6, %5 : vector<16x128xf32>
    %cst_6 = arith.constant 0.707106769 : f32
    %8 = vector.broadcast %cst_6 : f32 to vector<16x128xf32>
    %9 = arith.mulf %5, %8 : vector<16x128xf32>
    %10 = math.erf %9 : vector<16x128xf32>
    %cst_7 = arith.constant 1.000000e+00 : f32
    %11 = vector.broadcast %cst_7 : f32 to vector<16x128xf32>
    %12 = arith.addf %11, %10 : vector<16x128xf32>
    %13 = arith.mulf %7, %12 : vector<16x128xf32>
    %14 = arith.truncf %13 : vector<16x128xf32> to vector<16x128xbf16>
    %c0_8 = arith.constant 0 : index
    %c0_9 = arith.constant 0 : index
    %15 = vector.load %arg5[%c0_8, %c0_9] : memref<128x128xbf16, #tpu.memory_space<vmem>>, vector<128x128xbf16>
    %cst_10 = arith.constant dense<0.000000e+00> : vector<16x128xf32>
    %16 = tpu.matmul %14, %15, %cst_10 {dimension_numbers = #tpu.dot_dimension_numbers<[1], [0], [0], [1], [0, 0, 1, 1], [], []>} : vector<16x128xbf16>, vector<128x128xbf16>, vector<16x128xf32> -> vector<16x128xf32>
    %c0_11 = arith.constant 0 : index
    %c0_12 = arith.constant 0 : index
    %17 = vector.load %arg6[%c0_11, %c0_12] : memref<1x128xf32, #tpu.memory_space<vmem>>, vector<1x128xf32>
    %18 = vector.broadcast %17 : vector<1x128xf32> to vector<16x128xf32>
    %19 = arith.addf %16, %18 : vector<16x128xf32>
    %c0_13 = arith.constant 0 : index
    %c0_14 = arith.constant 0 : index
    %20 = vector.load %arg7[%c0_13, %c0_14] : memref<16x128xf32, #tpu.memory_space<vmem>>, vector<16x128xf32>
    tpu.vector_store %arg7[%c0_13, %c0_14], %19 {strides = array<i32>} : memref<16x128xf32, #tpu.memory_space<vmem>>, vector<16x128xf32>,
    return
  }
  func.func @transform_0(%arg0: i32, %arg1: i32) -> (i32, i32) {
    %c0_i32 = arith.constant 0 : i32
    %c0_i32_0 = arith.constant 0 : i32
    return %arg0, %c0_i32 : i32, i32
  }
  func.func @transform_1(%arg0: i32, %arg1: i32) -> (i32, i32) {
    %c0_i32 = arith.constant 0 : i32
    %c0_i32_0 = arith.constant 0 : i32
    return %c0_i32, %arg1 : i32, i32
  }
  func.func @transform_2(%arg0: i32, %arg1: i32) -> (i32, i32) {
    %c0_i32 = arith.constant 0 : i32
    %c0_i32_0 = arith.constant 0 : i32
    return %c0_i32, %arg1 : i32, i32
  }
  func.func @transform_3(%arg0: i32, %arg1: i32) -> (i32, i32) {
    %c0_i32 = arith.constant 0 : i32
    %c0_i32_0 = arith.constant 0 : i32
    return %arg1, %c0_i32 : i32, i32
  }
  func.func @transform_4(%arg0: i32, %arg1: i32) -> (i32, i32) {
    %c0_i32 = arith.constant 0 : i32
    %c0_i32_0 = arith.constant 0 : i32
    %c0_i32_1 = arith.constant 0 : i32
    return %c0_i32, %c0_i32_0 : i32, i32
  }
  func.func @transform_5(%arg0: i32, %arg1: i32) -> (i32, i32) {
    %c0_i32 = arith.constant 0 : i32
    %c0_i32_0 = arith.constant 0 : i32
    return %arg0, %c0_i32 : i32, i32
  }
}

module attributes {stable_mosaic.version = 11 : i64} {
  func.func @_mlp_kernel_single(%arg0: i32, %arg1: i32, %arg2: memref<16x128xbf16, #tpu.memory_space<vmem>>, %arg3: memref<128x128xbf16, #tpu.memory_space<vmem>>, %arg4: memref<1x128xf32, #tpu.memory_space<vmem>>, %arg5: memref<128x128xbf16, #tpu.memory_space<vmem>>, %arg6: memref<1x128xf32, #tpu.memory_space<vmem>>, %arg7: memref<16x128xf32, #tpu.memory_space<vmem>>) attributes {dimension_semantics = [#tpu.dimension_semantics<parallel>, #tpu.dimension_semantics<arbitrary>], iteration_bounds = array<i64: 1, 1>, scalar_prefetch = 0 : i64, scratch_operands = 0 : i64, tpu.core_type = #tpu.core_type<tc>, window_params = [{transform_indices = @transform_0, window_bounds = array<i64: 16, 128>}, {transform_indices = @transform_1, window_bounds = array<i64: 128, 128>}, {transform_indices = @transform_2, window_bounds = array<i64: 1, 128>}, {transform_indices = @transform_3, window_bounds = array<i64: 128, 128>}, {pipeline_mode = #tpu.pipeline_mode<synchronous>, transform_indices = @transform_4, window_bounds = array<i64: 1, 128>}, {transform_indices = @transform_5, window_bounds = array<i64: 16, 128>}]} {
    %c0 = arith.constant 0 : index
    %c0_0 = arith.constant 0 : index
    %0 = vector.load %arg2[%c0, %c0_0] : memref<16x128xbf16, #tpu.memory_space<vmem>>, vector<16x128xbf16>
    %c0_1 = arith.constant 0 : index
    %c0_2 = arith.constant 0 : index
    %1 = vector.load %arg3[%c0_1, %c0_2] : memref<128x128xbf16, #tpu.memory_space<vmem>>, vector<128x128xbf16>
    %cst = arith.constant dense<0.000000e+00> : vector<16x128xf32>
    %2 = tpu.matmul %0, %1, %cst {dimension_numbers = #tpu.dot_dimension_numbers<[1], [0], [0], [1], [0, 0, 1, 1], [], []>} : vector<16x128xbf16>, vector<128x128xbf16>, vector<16x128xf32> -> vector<16x128xf32>
    %c0_3 = arith.constant 0 : index
    %c0_4 = arith.constant 0 : index
    %3 = vector.load %arg4[%c0_3, %c0_4] : memref<1x128xf32, #tpu.memory_space<vmem>>, vector<1x128xf32>
    %4 = vector.broadcast %3 : vector<1x128xf32> to vector<16x128xf32>
    %5 = arith.addf %2, %4 : vector<16x128xf32>
    %cst_5 = arith.constant 5.000000e-01 : f32
    %6 = vector.broadcast %cst_5 : f32 to vector<16x128xf32>
    %7 = arith.mulf %6, %5 : vector<16x128xf32>
    %cst_6 = arith.constant 0.707106769 : f32
    %8 = vector.broadcast %cst_6 : f32 to vector<16x128xf32>
    %9 = arith.mulf %5, %8 : vector<16x128xf32>
    %10 = math.erf %9 : vector<16x128xf32>
    %cst_7 = arith.constant 1.000000e+00 : f32
    %11 = vector.broadcast %cst_7 : f32 to vector<16x128xf32>
    %12 = arith.addf %11, %10 : vector<16x128xf32>
    %13 = arith.mulf %7, %12 : vector<16x128xf32>
    %14 = arith.truncf %13 : vector<16x128xf32> to vector<16x128xbf16>
    %c0_8 = arith.constant 0 : index
    %c0_9 = arith.constant 0 : index
    %15 = vector.load %arg5[%c0_8, %c0_9] : memref<128x128xbf16, #tpu.memory_space<vmem>>, vector<128x128xbf16>
    %cst_10 = arith.constant dense<0.000000e+00> : vector<16x128xf32>
    %16 = tpu.matmul %14, %15, %cst_10 {dimension_numbers = #tpu.dot_dimension_numbers<[1], [0], [0], [1], [0, 0, 1, 1], [], []>} : vector<16x128xbf16>, vector<128x128xbf16>, vector<16x128xf32> -> vector<16x128xf32>
    %c0_11 = arith.constant 0 : index
    %c0_12 = arith.constant 0 : index
    %17 = vector.load %arg6[%c0_11, %c0_12] : memref<1x128xf32, #tpu.memory_space<vmem>>, vector<1x128xf32>
    %18 = vector.broadcast %17 : vector<1x128xf32> to vector<16x128xf32>
    %19 = arith.addf %16, %18 : vector<16x128xf32>
    %c0_13 = arith.constant 0 : index
    %c0_14 = arith.constant 0 : index
    %20 = vector.load %arg7[%c0_13, %c0_14] : memref<16x128xf32, #tpu.memory_space<vmem>>, vector<16x128xf32>
    tpu.vector_store %arg7[%c0_13, %c0_14], %19 {strides = array<i32>} : memref<16x128xf32, #tpu.memory_space<vmem>>, vector<16x128xf32>,
    return
  }
  func.func @transform_0(%arg0: i32, %arg1: i32) -> (i32, i32) {
    %c0_i32 = arith.constant 0 : i32
    %c0_i32_0 = arith.constant 0 : i32
    return %arg0, %c0_i32 : i32, i32
  }
  func.func @transform_1(%arg0: i32, %arg1: i32) -> (i32, i32) {
    %c0_i32 = arith.constant 0 : i32
    %c0_i32_0 = arith.constant 0 : i32
    return %c0_i32, %arg1 : i32, i32
  }
  func.func @transform_2(%arg0: i32, %arg1: i32) -> (i32, i32) {
    %c0_i32 = arith.constant 0 : i32
    %c0_i32_0 = arith.constant 0 : i32
    return %c0_i32, %arg1 : i32, i32
  }
  func.func @transform_3(%arg0: i32, %arg1: i32) -> (i32, i32) {
    %c0_i32 = arith.constant 0 : i32
    %c0_i32_0 = arith.constant 0 : i32
    return %arg1, %c0_i32 : i32, i32
  }
  func.func @transform_4(%arg0: i32, %arg1: i32) -> (i32, i32) {
    %c0_i32 = arith.constant 0 : i32
    %c0_i32_0 = arith.constant 0 : i32
    %c0_i32_1 = arith.constant 0 : i32
    return %c0_i32, %c0_i32_0 : i32, i32
  }
  func.func @transform_5(%arg0: i32, %arg1: i32) -> (i32, i32) {
    %c0_i32 = arith.constant 0 : i32
    %c0_i32_0 = arith.constant 0 : i32
    return %arg0, %c0_i32 : i32, i32
  }
}

</mosaic_0001>

<llo_original>
// kernel: tpu_custom_call.1
$region0: #{tpu_custom_call.1}
  #allocation0 [shape = 'u32[]', space=smem, size = 0x4, offset = 0x4, fixed_abs, tag = 'smem constant byte address 0x4 - core index']
  #allocation1 [shape = 'u32[144,128]{1,0:T(1,128)}', space=vmem, size = 0x12000, scoped, tag = 'internal scratch']
  %s0 = inlined_call_operand.hbm [shape: bf16[16,128], index: 0, kind: input, shape index: {}]
  %s1 = inlined_call_operand.hbm [shape: bf16[128,128], index: 1, kind: input, shape index: {}]
  %s2 = inlined_call_operand.vmem [shape: f32[1,128], index: 2, kind: input, shape index: {}]
  %s3 = inlined_call_operand.hbm [shape: bf16[128,128], index: 3, kind: input, shape index: {}]
  %s4 = inlined_call_operand.vmem [shape: f32[1,128], index: 4, kind: input, shape index: {}]
  %s5 = inlined_call_operand.hbm [shape: f32[16,128], index: 5, kind: output, shape index: {}]
  %s6 = sld [smem:[#allocation0]]
  $region42: #{tpu_custom_call.1} parent=0
    _
  %s8 = ssub.s32 1, %s6
  %s9 = scalar_select 0, %s8, %s6
  $region1: #{tpu_custom_call.1} parent=0
    #allocation2 [shape = 'u8[4096]{0}', space=vmem, size = 0x1000, scoped, tag = 'input window, operand 0, single buffered']
    #allocation3 [shape = 's32[1]{0}', space=sflag, size = 0x4, scoped, tag = 'scoped memory for tpu_custom_call.1']
    #allocation4 [shape = 's32[1]{0}', space=sflag, size = 0x4, scoped, tag = 'scoped memory for tpu_custom_call.1']
    #allocation5 [shape = 'u8[32768]{0}', space=vmem, size = 0x8000, scoped, tag = 'input window, operand 1, single buffered']
    #allocation6 [shape = 's32[1]{0}', space=sflag, size = 0x4, scoped, tag = 'scoped memory for tpu_custom_call.1']
    #allocation7 [shape = 'u8[32768]{0}', space=vmem, size = 0x8000, scoped, tag = 'input window, operand 3, single buffered']
    #allocation8 [shape = 'u8[8192]{0}', space=vmem, size = 0x2000, scoped, tag = 'output window, operand 0, single buffered']
    %10 = vsyncpa [#allocation3], 0
    %11 = vsyncpa [#allocation6], 0
    %12 = vsyncpa [#allocation4], 0
    // Predicated region
    $region2: #{tpu_custom_call.1} parent=1 // pred_check
      _
    $region3: #{tpu_custom_call.1} parent=1 // pred_check_branch
      %14 = sbr.rel (0) target = $region5
    $region4: #{tpu_custom_call.1} parent=1 // pred_region
      %s16 = ssub.s32 128, 128
      %17 = vsyncadd [#allocation3], %s16
      %s18 = sshll.u32 [#allocation2], 4
      %s19 = int_to_ptr.vmem [resolvable:$true] %s18
      %24 = dma.hbm_to_vmem [thread:$0]  %s0, 128, %s19, [#allocation3], 64, 64, 4
    $region5: #{tpu_custom_call.1} parent=1 // pred_fallthru
      _
    // Predicated region
    $region6: #{tpu_custom_call.1} parent=1 // pred_check
      _
    $region7: #{tpu_custom_call.1} parent=1 // pred_check_branch
      %26 = sbr.rel (0) target = $region9
    $region8: #{tpu_custom_call.1} parent=1 // pred_region
      %s28 = ssub.s32 1024, 1024
      %29 = vsyncadd [#allocation6], %s28
      %s30 = sshll.u32 [#allocation5], 4
      %s31 = int_to_ptr.vmem [resolvable:$true] %s30
      %36 = dma.hbm_to_vmem [thread:$0]  %s1, 1024, %s31, [#allocation6], 64, 64, 4
    $region9: #{tpu_custom_call.1} parent=1 // pred_fallthru
      _
    // Predicated region
    $region10: #{tpu_custom_call.1} parent=1 // pred_check
      _
    $region11: #{tpu_custom_call.1} parent=1 // pred_check_branch
      %38 = sbr.rel (0) target = $region13
    $region12: #{tpu_custom_call.1} parent=1 // pred_region
      _
    $region13: #{tpu_custom_call.1} parent=1 // pred_fallthru
      _
    // Predicated region
    $region14: #{tpu_custom_call.1} parent=1 // pred_check
      _
    $region15: #{tpu_custom_call.1} parent=1 // pred_check_branch
      %40 = sbr.rel (0) target = $region17
    $region16: #{tpu_custom_call.1} parent=1 // pred_region
      %s42 = ssub.s32 1024, 1024
      %43 = vsyncadd [#allocation6], %s42
      %s44 = sshll.u32 [#allocation7], 4
      %s45 = int_to_ptr.vmem [resolvable:$true] %s44
      %50 = dma.hbm_to_vmem [thread:$0]  %s3, 1024, %s45, [#allocation6], 64, 64, 4
    $region17: #{tpu_custom_call.1} parent=1 // pred_fallthru
      _
    // Predicated region
    $region18: #{tpu_custom_call.1} parent=1 // pred_check
      _
    $region19: #{tpu_custom_call.1} parent=1 // pred_check_branch
      %52 = sbr.rel (0) target = $region21
    $region20: #{tpu_custom_call.1} parent=1 // pred_region
      _
    $region21: #{tpu_custom_call.1} parent=1 // pred_fallthru
      _
    // Predicated region
    $region22: #{tpu_custom_call.1} parent=1 // pred_check
      _
    $region23: #{tpu_custom_call.1} parent=1 // pred_check_branch
      %54 = sbr.rel (0) target = $region25
    $region24: #{tpu_custom_call.1} parent=1 // pred_region
      %55 = dma.done [#allocation3], 128
    $region25: #{tpu_custom_call.1} parent=1 // pred_fallthru
      _
    // Predicated region
    $region26: #{tpu_custom_call.1} parent=1 // pred_check
      _
    $region27: #{tpu_custom_call.1} parent=1 // pred_check_branch
      %57 = sbr.rel (0) target = $region29
    $region28: #{tpu_custom_call.1} parent=1 // pred_region
      %58 = dma.done [#allocation6], 1024
    $region29: #{tpu_custom_call.1} parent=1 // pred_fallthru
      _
    // Predicated region
    $region30: #{tpu_custom_call.1} parent=1 // pred_check
      _
    $region31: #{tpu_custom_call.1} parent=1 // pred_check_branch
      %60 = sbr.rel (0) target = $region33
    $region32: #{tpu_custom_call.1} parent=1 // pred_region
      %61 = dma.done [#allocation6], 1024
    $region33: #{tpu_custom_call.1} parent=1 // pred_fallthru
      _
    %v63 = vld [vmem:[#allocation2] sm:$0xf]
    %v64 = vld [vmem:[#allocation2 + $0x4] sm:$0xf]
    %v65 = vld [vmem:[#allocation5] sm:$0xf]
    %v66 = vld [vmem:[#allocation5 + $0x4] sm:$0xf]
    %v67 = vld [vmem:[#allocation5 + $0x8] sm:$0xf]
    %v68 = vld [vmem:[#allocation5 + $0xc] sm:$0xf]
    %v69 = vld [vmem:[#allocation5 + $0x10] sm:$0xf]
    %v70 = vld [vmem:[#allocation5 + $0x14] sm:$0xf]
    %v71 = vld [vmem:[#allocation5 + $0x18] sm:$0xf]
    %v72 = vld [vmem:[#allocation5 + $0x1c] sm:$0xf]
    %v73 = vld [vmem:[#allocation5 + $0x20] sm:$0xf]
    %v74 = vld [vmem:[#allocation5 + $0x24] sm:$0xf]
    %v75 = vld [vmem:[#allocation5 + $0x28] sm:$0xf]
    %v76 = vld [vmem:[#allocation5 + $0x2c] sm:$0xf]
    %v77 = vld [vmem:[#allocation5 + $0x30] sm:$0xf]
    %v78 = vld [vmem:[#allocation5 + $0x34] sm:$0xf]
    %v79 = vld [vmem:[#allocation5 + $0x38] sm:$0xf]
    %v80 = vld [vmem:[#allocation5 + $0x3c] sm:$0xf]
    %v81 = vld [vmem:[%s2] sm:$0x1]
    %v83 = vlaneseq
    %v84 = vshrl.u32 %v83, 7
    %v85 = vsub.s32 0, %v84
    %v86 = vrot.slane %v81, %v85
    %v90 = vunpack.c.l.b16 %v63
    %v91 = vunpack.c.l.b16 %v64
    %v92 = vpack.c.b16 %v91, %v90
    %v110 = vunpack.c.l.b16 %v65
    %v111 = vunpack.c.l.b16 %v66
    %v112 = vunpack.c.l.b16 %v67
    %v113 = vunpack.c.l.b16 %v68
    %v114 = vunpack.c.l.b16 %v69
    %v115 = vunpack.c.l.b16 %v70
    %v116 = vunpack.c.l.b16 %v71
    %v117 = vunpack.c.l.b16 %v72
    %v118 = vunpack.c.l.b16 %v73
    %v119 = vunpack.c.l.b16 %v74
    %v120 = vunpack.c.l.b16 %v75
    %v121 = vunpack.c.l.b16 %v76
    %v122 = vunpack.c.l.b16 %v77
    %v123 = vunpack.c.l.b16 %v78
    %v124 = vunpack.c.l.b16 %v79
    %v125 = vunpack.c.l.b16 %v80
    %v126 = vpack.c.b16 %v111, %v110
    %v127 = vpack.c.b16 %v113, %v112
    %v128 = vpack.c.b16 %v115, %v114
    %v129 = vpack.c.b16 %v117, %v116
    %v130 = vpack.c.b16 %v119, %v118
    %v131 = vpack.c.b16 %v121, %v120
    %v132 = vpack.c.b16 %v123, %v122
    %v133 = vpack.c.b16 %v125, %v124
    %142 = vmatprep.subr.bf16.mxu0 0
    %143 = vmatpush1.bf16.msra.mxu0 %v126
    %144 = vmatprep.subr.bf16.mxu0 0
    %145 = vmatpush1.bf16.msra.mxu0 %v127
    %146 = vmatprep.subr.bf16.mxu0 0
    %147 = vmatpush1.bf16.msra.mxu0 %v128
    %148 = vmatprep.subr.bf16.mxu0 0
    %149 = vmatpush1.bf16.msra.mxu0 %v129
    %150 = vmatprep.subr.bf16.mxu0 0
    %151 = vmatpush1.bf16.msra.mxu0 %v130
    %152 = vmatprep.subr.bf16.mxu0 0
    %153 = vmatpush1.bf16.msra.mxu0 %v131
    %154 = vmatprep.subr.bf16.mxu0 0
    %155 = vmatpush1.bf16.msra.mxu0 %v132
    %156 = vmatprep.subr.bf16.mxu0 0
    %157 = vmatpush1.bf16.msra.mxu0 %v133
    %158 = vmatprep.subr.bf16.mxu0 0
    %159 = vmatpush1.bf16.msra.mxu0 0
    %160 = vmatprep.subr.bf16.mxu0 0
    %161 = vmatpush1.bf16.msra.mxu0 0
    %162 = vmatprep.subr.bf16.mxu0 0
    %163 = vmatpush1.bf16.msra.mxu0 0
    %164 = vmatprep.subr.bf16.mxu0 0
    %165 = vmatpush1.bf16.msra.mxu0 0
    %166 = vmatprep.subr.bf16.mxu0 0
    %167 = vmatpush1.bf16.msra.mxu0 0
    %168 = vmatprep.subr.bf16.mxu0 0
    %169 = vmatpush1.bf16.msra.mxu0 0
    %170 = vmatprep.subr.bf16.mxu0 0
    %171 = vmatpush1.bf16.msra.mxu0 0
    %172 = vmatprep.subr.bf16.mxu0 0
    %173 = vmatpush1.bf16.msra.mxu0 0
    %174 = vmatprep.mubr.bf16.mxu0 0
    %175 = vmatmul.mubr.bf16.gmra.mrb[0].mxu0 %v92
    %v176 = vpop.f32.mrb[0].mxu0
    %v177 = vadd.f32 %v86, %v176
    %v178 = vpop.f32.mrb[0].mxu0
    %v179 = vpop.f32.mrb[0].mxu0
    %v180 = vadd.f32 %v86, %v179
    %v181 = vpop.f32.mrb[0].mxu0
    %182 = vdwg.mxu0
    %v183 = vmul.f32 %v177, 0.5
    %v184 = vmul.f32 %v180, 0.5
    %v185 = vmul.f32 %v177, 0.70710677
    %v186 = vmul.f32 %v180, 0.70710677
    %v187 = verf.f32.pop %v185
    %v188 = verf.f32.pop %v186
    %v189 = vadd.f32 %v187, 1.0
    %v190 = vadd.f32 %v188, 1.0
    %v191 = vmul.f32 %v183, %v189
    %v192 = vmul.f32 %v184, %v190
    %v193 = vpack.c.bf16 %v192, %v191
    %v194 = vld [vmem:[#allocation7] sm:$0xf]
    %v195 = vld [vmem:[#allocation7 + $0x4] sm:$0xf]
    %v196 = vld [vmem:[#allocation7 + $0x8] sm:$0xf]
    %v197 = vld [vmem:[#allocation7 + $0xc] sm:$0xf]
    %v198 = vld [vmem:[#allocation7 + $0x10] sm:$0xf]
    %v199 = vld [vmem:[#allocation7 + $0x14] sm:$0xf]
    %v200 = vld [vmem:[#allocation7 + $0x18] sm:$0xf]
    %v201 = vld [vmem:[#allocation7 + $0x1c] sm:$0xf]
    %v202 = vld [vmem:[#allocation7 + $0x20] sm:$0xf]
    %v203 = vld [vmem:[#allocation7 + $0x24] sm:$0xf]
    %v204 = vld [vmem:[#allocation7 + $0x28] sm:$0xf]
    %v205 = vld [vmem:[#allocation7 + $0x2c] sm:$0xf]
    %v206 = vld [vmem:[#allocation7 + $0x30] sm:$0xf]
    %v207 = vld [vmem:[#allocation7 + $0x34] sm:$0xf]
    %v208 = vld [vmem:[#allocation7 + $0x38] sm:$0xf]
    %v209 = vld [vmem:[#allocation7 + $0x3c] sm:$0xf]
    %v210 = vld [vmem:[%s4] sm:$0x1]
    %v212 = vlaneseq
    %v213 = vshrl.u32 %v212, 7
    %v214 = vsub.s32 0, %v213
    %v215 = vrot.slane %v210, %v214
    %v233 = vunpack.c.l.b16 %v194
    %v234 = vunpack.c.l.b16 %v195
    %v235 = vunpack.c.l.b16 %v196
    %v236 = vunpack.c.l.b16 %v197
    %v237 = vunpack.c.l.b16 %v198
    %v238 = vunpack.c.l.b16 %v199
    %v239 = vunpack.c.l.b16 %v200
    %v240 = vunpack.c.l.b16 %v201
    %v241 = vunpack.c.l.b16 %v202
    %v242 = vunpack.c.l.b16 %v203
    %v243 = vunpack.c.l.b16 %v204
    %v244 = vunpack.c.l.b16 %v205
    %v245 = vunpack.c.l.b16 %v206
    %v246 = vunpack.c.l.b16 %v207
    %v247 = vunpack.c.l.b16 %v208
    %v248 = vunpack.c.l.b16 %v209
    %v249 = vpack.c.b16 %v234, %v233
    %v250 = vpack.c.b16 %v236, %v235
    %v251 = vpack.c.b16 %v238, %v237
    %v252 = vpack.c.b16 %v240, %v239
    %v253 = vpack.c.b16 %v242, %v241
    %v254 = vpack.c.b16 %v244, %v243
    %v255 = vpack.c.b16 %v246, %v245
    %v256 = vpack.c.b16 %v248, %v247
    %265 = vmatprep.subr.bf16.mxu0 0
    %266 = vmatpush1.bf16.msra.mxu0 %v249
    %267 = vmatprep.subr.bf16.mxu0 0
    %268 = vmatpush1.bf16.msra.mxu0 %v250
    %269 = vmatprep.subr.bf16.mxu0 0
    %270 = vmatpush1.bf16.msra.mxu0 %v251
    %271 = vmatprep.subr.bf16.mxu0 0
    %272 = vmatpush1.bf16.msra.mxu0 %v252
    %273 = vmatprep.subr.bf16.mxu0 0
    %274 = vmatpush1.bf16.msra.mxu0 %v253
    %275 = vmatprep.subr.bf16.mxu0 0
    %276 = vmatpush1.bf16.msra.mxu0 %v254
    %277 = vmatprep.subr.bf16.mxu0 0
    %278 = vmatpush1.bf16.msra.mxu0 %v255
    %279 = vmatprep.subr.bf16.mxu0 0
    %280 = vmatpush1.bf16.msra.mxu0 %v256
    %281 = vmatprep.subr.bf16.mxu0 0
    %282 = vmatpush1.bf16.msra.mxu0 0
    %283 = vmatprep.subr.bf16.mxu0 0
    %284 = vmatpush1.bf16.msra.mxu0 0
    %285 = vmatprep.subr.bf16.mxu0 0
    %286 = vmatpush1.bf16.msra.mxu0 0
    %287 = vmatprep.subr.bf16.mxu0 0
    %288 = vmatpush1.bf16.msra.mxu0 0
    %289 = vmatprep.subr.bf16.mxu0 0
    %290 = vmatpush1.bf16.msra.mxu0 0
    %291 = vmatprep.subr.bf16.mxu0 0
    %292 = vmatpush1.bf16.msra.mxu0 0
    %293 = vmatprep.subr.bf16.mxu0 0
    %294 = vmatpush1.bf16.msra.mxu0 0
    %295 = vmatprep.subr.bf16.mxu0 0
    %296 = vmatpush1.bf16.msra.mxu0 0
    %297 = vmatprep.mubr.bf16.mxu0 0
    %298 = vmatmul.mubr.bf16.gmra.mrb[0].mxu0 %v193
    %v299 = vpop.f32.mrb[0].mxu0
    %v300 = vadd.f32 %v215, %v299
    %v301 = vpop.f32.mrb[0].mxu0
    %v302 = vpop.f32.mrb[0].mxu0
    %v303 = vadd.f32 %v215, %v302
    %v304 = vpop.f32.mrb[0].mxu0
    %305 = vdwg.mxu0
    %306 = vst [vmem:[#allocation8] sm:$0xff] %v300
    %307 = vst [vmem:[#allocation8 + $0x8] sm:$0xff] %v303
    // Predicated region
    $region34: #{tpu_custom_call.1} parent=1 // pred_check
      _
    $region35: #{tpu_custom_call.1} parent=1 // pred_check_branch
      %309 = sbr.rel (0) target = $region37
    $region36: #{tpu_custom_call.1} parent=1 // pred_region
      %s311 = ssub.s32 256, 256
      %312 = vsyncadd [#allocation4], %s311
      %s313 = sshll.u32 [#allocation8], 4
      %s314 = int_to_ptr.vmem [resolvable:$true] %s313
      %319 = dma.vmem_to_hbm [thread:$0]  %s314, 256, %s5, [#allocation4], 128, 128, 8
    $region37: #{tpu_custom_call.1} parent=1 // pred_fallthru
      _
    // Predicated region
    $region38: #{tpu_custom_call.1} parent=1 // pred_check
      _
    $region39: #{tpu_custom_call.1} parent=1 // pred_check_branch
      %321 = sbr.rel (0) target = $region41
    $region40: #{tpu_custom_call.1} parent=1 // pred_region
      %322 = dma.done [#allocation4], 256
    $region41: #{tpu_custom_call.1} parent=1 // pred_fallthru
      _
    %323 = vsyncpa [#allocation3], 1
    %324 = vsyncpa [#allocation6], 1
    %325 = vsyncpa [#allocation4], 1

// kernel: tpu_custom_call.1
$region0: #{tpu_custom_call.1}
  #allocation0 [shape = 'u32[]', space=smem, size = 0x4, offset = 0x4, fixed_abs, tag = 'smem constant byte address 0x4 - core index']
  #allocation1 [shape = 'u32[144,128]{1,0:T(1,128)}', space=vmem, size = 0x12000, scoped, tag = 'internal scratch']
  %s0 = inlined_call_operand.hbm [shape: bf16[16,128], index: 0, kind: input, shape index: {}]
  %s1 = inlined_call_operand.hbm [shape: bf16[128,128], index: 1, kind: input, shape index: {}]
  %s2 = inlined_call_operand.vmem [shape: f32[1,128], index: 2, kind: input, shape index: {}]
  %s3 = inlined_call_operand.hbm [shape: bf16[128,128], index: 3, kind: input, shape index: {}]
  %s4 = inlined_call_operand.vmem [shape: f32[1,128], index: 4, kind: input, shape index: {}]
  %s5 = inlined_call_operand.hbm [shape: f32[16,128], index: 5, kind: output, shape index: {}]
  %s6 = sld [smem:[#allocation0]]
  $region42: #{tpu_custom_call.1} parent=0
    _
  %s8 = ssub.s32 1, %s6
  %s9 = scalar_select 0, %s8, %s6
  $region1: #{tpu_custom_call.1} parent=0
    #allocation2 [shape = 'u8[4096]{0}', space=vmem, size = 0x1000, scoped, tag = 'input window, operand 0, single buffered']
    #allocation3 [shape = 's32[1]{0}', space=sflag, size = 0x4, scoped, tag = 'scoped memory for tpu_custom_call.1']
    #allocation4 [shape = 's32[1]{0}', space=sflag, size = 0x4, scoped, tag = 'scoped memory for tpu_custom_call.1']
    #allocation5 [shape = 'u8[32768]{0}', space=vmem, size = 0x8000, scoped, tag = 'input window, operand 1, single buffered']
    #allocation6 [shape = 's32[1]{0}', space=sflag, size = 0x4, scoped, tag = 'scoped memory for tpu_custom_call.1']
    #allocation7 [shape = 'u8[32768]{0}', space=vmem, size = 0x8000, scoped, tag = 'input window, operand 3, single buffered']
    #allocation8 [shape = 'u8[8192]{0}', space=vmem, size = 0x2000, scoped, tag = 'output window, operand 0, single buffered']
    %10 = vsyncpa [#allocation3], 0
    %11 = vsyncpa [#allocation6], 0
    %12 = vsyncpa [#allocation4], 0
    // Predicated region
    $region2: #{tpu_custom_call.1} parent=1 // pred_check
      _
    $region3: #{tpu_custom_call.1} parent=1 // pred_check_branch
      %14 = sbr.rel (0) target = $region5
    $region4: #{tpu_custom_call.1} parent=1 // pred_region
      %s16 = ssub.s32 128, 128
      %17 = vsyncadd [#allocation3], %s16
      %s18 = sshll.u32 [#allocation2], 4
      %s19 = int_to_ptr.vmem [resolvable:$true] %s18
      %24 = dma.hbm_to_vmem [thread:$0]  %s0, 128, %s19, [#allocation3], 64, 64, 4
    $region5: #{tpu_custom_call.1} parent=1 // pred_fallthru
      _
    // Predicated region
    $region6: #{tpu_custom_call.1} parent=1 // pred_check
      _
    $region7: #{tpu_custom_call.1} parent=1 // pred_check_branch
      %26 = sbr.rel (0) target = $region9
    $region8: #{tpu_custom_call.1} parent=1 // pred_region
      %s28 = ssub.s32 1024, 1024
      %29 = vsyncadd [#allocation6], %s28
      %s30 = sshll.u32 [#allocation5], 4
      %s31 = int_to_ptr.vmem [resolvable:$true] %s30
      %36 = dma.hbm_to_vmem [thread:$0]  %s1, 1024, %s31, [#allocation6], 64, 64, 4
    $region9: #{tpu_custom_call.1} parent=1 // pred_fallthru
      _
    // Predicated region
    $region10: #{tpu_custom_call.1} parent=1 // pred_check
      _
    $region11: #{tpu_custom_call.1} parent=1 // pred_check_branch
      %38 = sbr.rel (0) target = $region13
    $region12: #{tpu_custom_call.1} parent=1 // pred_region
      _
    $region13: #{tpu_custom_call.1} parent=1 // pred_fallthru
      _
    // Predicated region
    $region14: #{tpu_custom_call.1} parent=1 // pred_check
      _
    $region15: #{tpu_custom_call.1} parent=1 // pred_check_branch
      %40 = sbr.rel (0) target = $region17
    $region16: #{tpu_custom_call.1} parent=1 // pred_region
      %s42 = ssub.s32 1024, 1024
      %43 = vsyncadd [#allocation6], %s42
      %s44 = sshll.u32 [#allocation7], 4
      %s45 = int_to_ptr.vmem [resolvable:$true] %s44
      %50 = dma.hbm_to_vmem [thread:$0]  %s3, 1024, %s45, [#allocation6], 64, 64, 4
    $region17: #{tpu_custom_call.1} parent=1 // pred_fallthru
      _
    // Predicated region
    $region18: #{tpu_custom_call.1} parent=1 // pred_check
      _
    $region19: #{tpu_custom_call.1} parent=1 // pred_check_branch
      %52 = sbr.rel (0) target = $region21
    $region20: #{tpu_custom_call.1} parent=1 // pred_region
      _
    $region21: #{tpu_custom_call.1} parent=1 // pred_fallthru
      _
    // Predicated region
    $region22: #{tpu_custom_call.1} parent=1 // pred_check
      _
    $region23: #{tpu_custom_call.1} parent=1 // pred_check_branch
      %54 = sbr.rel (0) target = $region25
    $region24: #{tpu_custom_call.1} parent=1 // pred_region
      %55 = dma.done [#allocation3], 128
    $region25: #{tpu_custom_call.1} parent=1 // pred_fallthru
      _
    // Predicated region
    $region26: #{tpu_custom_call.1} parent=1 // pred_check
      _
    $region27: #{tpu_custom_call.1} parent=1 // pred_check_branch
      %57 = sbr.rel (0) target = $region29
    $region28: #{tpu_custom_call.1} parent=1 // pred_region
      %58 = dma.done [#allocation6], 1024
    $region29: #{tpu_custom_call.1} parent=1 // pred_fallthru
      _
    // Predicated region
    $region30: #{tpu_custom_call.1} parent=1 // pred_check
      _
    $region31: #{tpu_custom_call.1} parent=1 // pred_check_branch
      %60 = sbr.rel (0) target = $region33
    $region32: #{tpu_custom_call.1} parent=1 // pred_region
      %61 = dma.done [#allocation6], 1024
    $region33: #{tpu_custom_call.1} parent=1 // pred_fallthru
      _
    %v63 = vld [vmem:[#allocation2] sm:$0xf]
    %v64 = vld [vmem:[#allocation2 + $0x4] sm:$0xf]
    %v65 = vld [vmem:[#allocation5] sm:$0xf]
    %v66 = vld [vmem:[#allocation5 + $0x4] sm:$0xf]
    %v67 = vld [vmem:[#allocation5 + $0x8] sm:$0xf]
    %v68 = vld [vmem:[#allocation5 + $0xc] sm:$0xf]
    %v69 = vld [vmem:[#allocation5 + $0x10] sm:$0xf]
    %v70 = vld [vmem:[#allocation5 + $0x14] sm:$0xf]
    %v71 = vld [vmem:[#allocation5 + $0x18] sm:$0xf]
    %v72 = vld [vmem:[#allocation5 + $0x1c] sm:$0xf]
    %v73 = vld [vmem:[#allocation5 + $0x20] sm:$0xf]
    %v74 = vld [vmem:[#allocation5 + $0x24] sm:$0xf]
    %v75 = vld [vmem:[#allocation5 + $0x28] sm:$0xf]
    %v76 = vld [vmem:[#allocation5 + $0x2c] sm:$0xf]
    %v77 = vld [vmem:[#allocation5 + $0x30] sm:$0xf]
    %v78 = vld [vmem:[#allocation5 + $0x34] sm:$0xf]
    %v79 = vld [vmem:[#allocation5 + $0x38] sm:$0xf]
    %v80 = vld [vmem:[#allocation5 + $0x3c] sm:$0xf]
    %v81 = vld [vmem:[%s2] sm:$0x1]
    %v83 = vlaneseq
    %v84 = vshrl.u32 %v83, 7
    %v85 = vsub.s32 0, %v84
    %v86 = vrot.slane %v81, %v85
    %v90 = vunpack.c.l.b16 %v63
    %v91 = vunpack.c.l.b16 %v64
    %v92 = vpack.c.b16 %v91, %v90
    %v110 = vunpack.c.l.b16 %v65
    %v111 = vunpack.c.l.b16 %v66
    %v112 = vunpack.c.l.b16 %v67
    %v113 = vunpack.c.l.b16 %v68
    %v114 = vunpack.c.l.b16 %v69
    %v115 = vunpack.c.l.b16 %v70
    %v116 = vunpack.c.l.b16 %v71
    %v117 = vunpack.c.l.b16 %v72
    %v118 = vunpack.c.l.b16 %v73
    %v119 = vunpack.c.l.b16 %v74
    %v120 = vunpack.c.l.b16 %v75
    %v121 = vunpack.c.l.b16 %v76
    %v122 = vunpack.c.l.b16 %v77
    %v123 = vunpack.c.l.b16 %v78
    %v124 = vunpack.c.l.b16 %v79
    %v125 = vunpack.c.l.b16 %v80
    %v126 = vpack.c.b16 %v111, %v110
    %v127 = vpack.c.b16 %v113, %v112
    %v128 = vpack.c.b16 %v115, %v114
    %v129 = vpack.c.b16 %v117, %v116
    %v130 = vpack.c.b16 %v119, %v118
    %v131 = vpack.c.b16 %v121, %v120
    %v132 = vpack.c.b16 %v123, %v122
    %v133 = vpack.c.b16 %v125, %v124
    %142 = vmatprep.subr.bf16.mxu0 0
    %143 = vmatpush1.bf16.msra.mxu0 %v126
    %144 = vmatprep.subr.bf16.mxu0 0
    %145 = vmatpush1.bf16.msra.mxu0 %v127
    %146 = vmatprep.subr.bf16.mxu0 0
    %147 = vmatpush1.bf16.msra.mxu0 %v128
    %148 = vmatprep.subr.bf16.mxu0 0
    %149 = vmatpush1.bf16.msra.mxu0 %v129
    %150 = vmatprep.subr.bf16.mxu0 0
    %151 = vmatpush1.bf16.msra.mxu0 %v130
    %152 = vmatprep.subr.bf16.mxu0 0
    %153 = vmatpush1.bf16.msra.mxu0 %v131
    %154 = vmatprep.subr.bf16.mxu0 0
    %155 = vmatpush1.bf16.msra.mxu0 %v132
    %156 = vmatprep.subr.bf16.mxu0 0
    %157 = vmatpush1.bf16.msra.mxu0 %v133
    %158 = vmatprep.subr.bf16.mxu0 0
    %159 = vmatpush1.bf16.msra.mxu0 0
    %160 = vmatprep.subr.bf16.mxu0 0
    %161 = vmatpush1.bf16.msra.mxu0 0
    %162 = vmatprep.subr.bf16.mxu0 0
    %163 = vmatpush1.bf16.msra.mxu0 0
    %164 = vmatprep.subr.bf16.mxu0 0
    %165 = vmatpush1.bf16.msra.mxu0 0
    %166 = vmatprep.subr.bf16.mxu0 0
    %167 = vmatpush1.bf16.msra.mxu0 0
    %168 = vmatprep.subr.bf16.mxu0 0
    %169 = vmatpush1.bf16.msra.mxu0 0
    %170 = vmatprep.subr.bf16.mxu0 0
    %171 = vmatpush1.bf16.msra.mxu0 0
    %172 = vmatprep.subr.bf16.mxu0 0
    %173 = vmatpush1.bf16.msra.mxu0 0
    %174 = vmatprep.mubr.bf16.mxu0 0
    %175 = vmatmul.mubr.bf16.gmra.mrb[0].mxu0 %v92
    %v176 = vpop.f32.mrb[0].mxu0
    %v177 = vadd.f32 %v86, %v176
    %v178 = vpop.f32.mrb[0].mxu0
    %v179 = vpop.f32.mrb[0].mxu0
    %v180 = vadd.f32 %v86, %v179
    %v181 = vpop.f32.mrb[0].mxu0
    %182 = vdwg.mxu0
    %v183 = vmul.f32 %v177, 0.5
    %v184 = vmul.f32 %v180, 0.5
    %v185 = vmul.f32 %v177, 0.70710677
    %v186 = vmul.f32 %v180, 0.70710677
    %v187 = verf.f32.pop %v185
    %v188 = verf.f32.pop %v186
    %v189 = vadd.f32 %v187, 1.0
    %v190 = vadd.f32 %v188, 1.0
    %v191 = vmul.f32 %v183, %v189
    %v192 = vmul.f32 %v184, %v190
    %v193 = vpack.c.bf16 %v192, %v191
    %v194 = vld [vmem:[#allocation7] sm:$0xf]
    %v195 = vld [vmem:[#allocation7 + $0x4] sm:$0xf]
    %v196 = vld [vmem:[#allocation7 + $0x8] sm:$0xf]
    %v197 = vld [vmem:[#allocation7 + $0xc] sm:$0xf]
    %v198 = vld [vmem:[#allocation7 + $0x10] sm:$0xf]
    %v199 = vld [vmem:[#allocation7 + $0x14] sm:$0xf]
    %v200 = vld [vmem:[#allocation7 + $0x18] sm:$0xf]
    %v201 = vld [vmem:[#allocation7 + $0x1c] sm:$0xf]
    %v202 = vld [vmem:[#allocation7 + $0x20] sm:$0xf]
    %v203 = vld [vmem:[#allocation7 + $0x24] sm:$0xf]
    %v204 = vld [vmem:[#allocation7 + $0x28] sm:$0xf]
    %v205 = vld [vmem:[#allocation7 + $0x2c] sm:$0xf]
    %v206 = vld [vmem:[#allocation7 + $0x30] sm:$0xf]
    %v207 = vld [vmem:[#allocation7 + $0x34] sm:$0xf]
    %v208 = vld [vmem:[#allocation7 + $0x38] sm:$0xf]
    %v209 = vld [vmem:[#allocation7 + $0x3c] sm:$0xf]
    %v210 = vld [vmem:[%s4] sm:$0x1]
    %v212 = vlaneseq
    %v213 = vshrl.u32 %v212, 7
    %v214 = vsub.s32 0, %v213
    %v215 = vrot.slane %v210, %v214
    %v233 = vunpack.c.l.b16 %v194
    %v234 = vunpack.c.l.b16 %v195
    %v235 = vunpack.c.l.b16 %v196
    %v236 = vunpack.c.l.b16 %v197
    %v237 = vunpack.c.l.b16 %v198
    %v238 = vunpack.c.l.b16 %v199
    %v239 = vunpack.c.l.b16 %v200
    %v240 = vunpack.c.l.b16 %v201
    %v241 = vunpack.c.l.b16 %v202
    %v242 = vunpack.c.l.b16 %v203
    %v243 = vunpack.c.l.b16 %v204
    %v244 = vunpack.c.l.b16 %v205
    %v245 = vunpack.c.l.b16 %v206
    %v246 = vunpack.c.l.b16 %v207
    %v247 = vunpack.c.l.b16 %v208
    %v248 = vunpack.c.l.b16 %v209
    %v249 = vpack.c.b16 %v234, %v233
    %v250 = vpack.c.b16 %v236, %v235
    %v251 = vpack.c.b16 %v238, %v237
    %v252 = vpack.c.b16 %v240, %v239
    %v253 = vpack.c.b16 %v242, %v241
    %v254 = vpack.c.b16 %v244, %v243
    %v255 = vpack.c.b16 %v246, %v245
    %v256 = vpack.c.b16 %v248, %v247
    %265 = vmatprep.subr.bf16.mxu0 0
    %266 = vmatpush1.bf16.msra.mxu0 %v249
    %267 = vmatprep.subr.bf16.mxu0 0
    %268 = vmatpush1.bf16.msra.mxu0 %v250
    %269 = vmatprep.subr.bf16.mxu0 0
    %270 = vmatpush1.bf16.msra.mxu0 %v251
    %271 = vmatprep.subr.bf16.mxu0 0
    %272 = vmatpush1.bf16.msra.mxu0 %v252
    %273 = vmatprep.subr.bf16.mxu0 0
    %274 = vmatpush1.bf16.msra.mxu0 %v253
    %275 = vmatprep.subr.bf16.mxu0 0
    %276 = vmatpush1.bf16.msra.mxu0 %v254
    %277 = vmatprep.subr.bf16.mxu0 0
    %278 = vmatpush1.bf16.msra.mxu0 %v255
    %279 = vmatprep.subr.bf16.mxu0 0
    %280 = vmatpush1.bf16.msra.mxu0 %v256
    %281 = vmatprep.subr.bf16.mxu0 0
    %282 = vmatpush1.bf16.msra.mxu0 0
    %283 = vmatprep.subr.bf16.mxu0 0
    %284 = vmatpush1.bf16.msra.mxu0 0
    %285 = vmatprep.subr.bf16.mxu0 0
    %286 = vmatpush1.bf16.msra.mxu0 0
    %287 = vmatprep.subr.bf16.mxu0 0
    %288 = vmatpush1.bf16.msra.mxu0 0
    %289 = vmatprep.subr.bf16.mxu0 0
    %290 = vmatpush1.bf16.msra.mxu0 0
    %291 = vmatprep.subr.bf16.mxu0 0
    %292 = vmatpush1.bf16.msra.mxu0 0
    %293 = vmatprep.subr.bf16.mxu0 0
    %294 = vmatpush1.bf16.msra.mxu0 0
    %295 = vmatprep.subr.bf16.mxu0 0
    %296 = vmatpush1.bf16.msra.mxu0 0
    %297 = vmatprep.mubr.bf16.mxu0 0
    %298 = vmatmul.mubr.bf16.gmra.mrb[0].mxu0 %v193
    %v299 = vpop.f32.mrb[0].mxu0
    %v300 = vadd.f32 %v215, %v299
    %v301 = vpop.f32.mrb[0].mxu0
    %v302 = vpop.f32.mrb[0].mxu0
    %v303 = vadd.f32 %v215, %v302
    %v304 = vpop.f32.mrb[0].mxu0
    %305 = vdwg.mxu0
    %306 = vst [vmem:[#allocation8] sm:$0xff] %v300
    %307 = vst [vmem:[#allocation8 + $0x8] sm:$0xff] %v303
    // Predicated region
    $region34: #{tpu_custom_call.1} parent=1 // pred_check
      _
    $region35: #{tpu_custom_call.1} parent=1 // pred_check_branch
      %309 = sbr.rel (0) target = $region37
    $region36: #{tpu_custom_call.1} parent=1 // pred_region
      %s311 = ssub.s32 256, 256
      %312 = vsyncadd [#allocation4], %s311
      %s313 = sshll.u32 [#allocation8], 4
      %s314 = int_to_ptr.vmem [resolvable:$true] %s313
      %319 = dma.vmem_to_hbm [thread:$0]  %s314, 256, %s5, [#allocation4], 128, 128, 8
    $region37: #{tpu_custom_call.1} parent=1 // pred_fallthru
      _
    // Predicated region
    $region38: #{tpu_custom_call.1} parent=1 // pred_check
      _
    $region39: #{tpu_custom_call.1} parent=1 // pred_check_branch
      %321 = sbr.rel (0) target = $region41
    $region40: #{tpu_custom_call.1} parent=1 // pred_region
      %322 = dma.done [#allocation4], 256
    $region41: #{tpu_custom_call.1} parent=1 // pred_fallthru
      _
    %323 = vsyncpa [#allocation3], 1
    %324 = vsyncpa [#allocation6], 1
    %325 = vsyncpa [#allocation4], 1

</llo_original>
